<compile_context>
chip_gen: v7x
topology: tpu7x:2x2x1
jax: 0.10.0
libtpu: 0.0.40
codegen_flags: <defaults>
</compile_context>

<pallas_src>
import jax
import jax.numpy as jnp
from jax.experimental import pallas as pl
from jax.experimental.pallas import tpu as pltpu

CIN = 960
COUT = 40
COUT_PAD = 128  # pad packed weight to one full 128-lane vreg column


def _conv1x1_kernel(x_ref, w_ref, b_ref, o_ref):
    # x_ref: (M, Cin) f32 | bf16, w_ref: (Cin, Cout_pad) bf16,
    # b_ref: (1, Cout)  f32,      o_ref: (M, Cout) activation dtype
    x = x_ref[...].astype(jnp.bfloat16)            # in-kernel cast (free VPU pack)
    acc = jnp.dot(x, w_ref[...], preferred_element_type=jnp.float32)
    o_ref[...] = (acc[:, :COUT] + b_ref[...]).astype(o_ref.dtype)


def prepare_params(weight, bias):
    """One-time parameter packing (call at init, NOT per forward pass).

    weight: [Cout, Cin, 1, 1] f32 -> [Cin, Cout_pad] bf16 (transposed, zero-padded)
    bias:   [Cout]            f32 -> [1, Cout]       f32
    """
    cout, cin = weight.shape[0], weight.shape[1]
    w2d = weight.reshape(cout, cin).T                          # [Cin, Cout]
    w_packed = jnp.zeros((cin, COUT_PAD), dtype=jnp.bfloat16)
    w_packed = w_packed.at[:, :cout].set(w2d.astype(jnp.bfloat16))
    b_packed = bias.reshape(1, cout).astype(jnp.float32)
    return w_packed, b_packed


def conv2d_1x1(x_nchw, w_packed, b_packed, cout=COUT):
    """x_nchw: [N, Cin, 1, 1]; packed params from prepare_params(); returns [N, Cout, 1, 1]."""
    N, Cin, H, W = x_nchw.shape
    assert H == 1 and W == 1, "1x1 conv helper specialized to H=W=1"
    M = N  # H=W=1 => pure channel mixing; reshape below is metadata-only

    x2d = x_nchw.reshape(M, Cin)  # no wrapper-side cast; cast happens in-kernel

    out_dtype = x_nchw.dtype
    cost = pl.CostEstimate(
        flops=2 * M * Cin * cout,
        transcendentals=0,
        bytes_accessed=(w_packed.size * w_packed.dtype.itemsize
                        + x2d.size * x2d.dtype.itemsize
                        + b_packed.size * 4
                        + M * cout * jnp.dtype(out_dtype).itemsize),
    )

    out2d = pl.pallas_call(
        _conv1x1_kernel,
        out_shape=jax.ShapeDtypeStruct((M, cout), out_dtype),
        in_specs=[
            pl.BlockSpec(memory_space=pltpu.MemorySpace.VMEM),
            pl.BlockSpec(memory_space=pltpu.MemorySpace.VMEM),
            pl.BlockSpec(memory_space=pltpu.MemorySpace.VMEM),
        ],
        out_specs=pl.BlockSpec(memory_space=pltpu.MemorySpace.VMEM),
        cost_estimate=cost,
    )(x2d, w_packed, b_packed)

    # Metadata-only reshape back to NCHW (no slice, no cast).
    return out2d.reshape(N, cout, 1, 1)


if __name__ == "__main__":
    key = jax.random.PRNGKey(0)
    kx, kw, kb = jax.random.split(key, 3)

    # Shapes implied by the module: input [1, 960, 1, 1], Conv2d(960, 40, 1x1).
    x = jax.random.normal(kx, (1, 960, 1, 1), dtype=jnp.float32)
    weight = jax.random.normal(kw, (40, 960, 1, 1), dtype=jnp.float32) * 0.02
    bias = jax.random.normal(kb, (40,), dtype=jnp.float32) * 0.02

    # Parameter packing done once (init-time), outside the forward path.
    w_packed, b_packed = prepare_params(weight, bias)

    out = conv2d_1x1(x, w_packed, b_packed)
    jax.block_until_ready(out)

    # Sanity check vs plain f32 JAX reference (bf16 MXU inputs -> looser tolerance).
    ref = (x.reshape(1, 960) @ weight.reshape(40, 960).T + bias).reshape(1, 40, 1, 1)
    assert out.shape == (1, 40, 1, 1)
    assert out.dtype == x.dtype
    assert jnp.allclose(out, ref, atol=2e-2, rtol=2e-2)

    print("KERNEL_OK")
</pallas_src>

<mosaic_0001>
module attributes {stable_mosaic.version = 11 : i64} {
  func.func @_conv1x1_kernel(%arg0: memref<1x960xf32, #tpu.memory_space<vmem>>, %arg1: memref<960x128xbf16, #tpu.memory_space<vmem>>, %arg2: memref<1x40xf32, #tpu.memory_space<vmem>>, %arg3: memref<1x40xf32, #tpu.memory_space<vmem>>) attributes {dimension_semantics = [], scalar_prefetch = 0 : i64, scratch_operands = 0 : i64, tpu.core_type = #tpu.core_type<tc>} {
    %c0 = arith.constant 0 : index
    %c0_0 = arith.constant 0 : index
    %0 = vector.load %arg0[%c0, %c0_0] : memref<1x960xf32, #tpu.memory_space<vmem>>, vector<1x960xf32>
    %1 = arith.truncf %0 : vector<1x960xf32> to vector<1x960xbf16>
    %c0_1 = arith.constant 0 : index
    %c0_2 = arith.constant 0 : index
    %2 = vector.load %arg1[%c0_1, %c0_2] : memref<960x128xbf16, #tpu.memory_space<vmem>>, vector<960x128xbf16>
    %cst = arith.constant dense<0.000000e+00> : vector<1x128xf32>
    %3 = tpu.matmul %1, %2, %cst {dimension_numbers = #tpu.dot_dimension_numbers<[1], [0], [0], [1], [0, 0, 1, 1], [], []>} : vector<1x960xbf16>, vector<960x128xbf16>, vector<1x128xf32> -> vector<1x128xf32>
    %4 = vector.extract_strided_slice %3 {offsets = [0, 0], sizes = [1, 40], strides = [1, 1]} : vector<1x128xf32> to vector<1x40xf32>
    %c0_3 = arith.constant 0 : index
    %c0_4 = arith.constant 0 : index
    %5 = vector.load %arg2[%c0_3, %c0_4] : memref<1x40xf32, #tpu.memory_space<vmem>>, vector<1x40xf32>
    %6 = arith.addf %4, %5 : vector<1x40xf32>
    %c0_5 = arith.constant 0 : index
    %c0_6 = arith.constant 0 : index
    %7 = vector.load %arg3[%c0_5, %c0_6] : memref<1x40xf32, #tpu.memory_space<vmem>>, vector<1x40xf32>
    tpu.vector_store %arg3[%c0_5, %c0_6], %6 {strides = array<i32>} : memref<1x40xf32, #tpu.memory_space<vmem>>, vector<1x40xf32>,
    return
  }
}

</mosaic_0001>

<llo_original>
// kernel: tpu_custom_call.1
$region0: #{tpu_custom_call.1}
  #allocation0 [shape = 'u32[]', space=smem, size = 0x4, offset = 0x4, fixed_abs, tag = 'smem constant byte address 0x4 - core index']
  #allocation1 [shape = 'u32[144,128]{1,0:T(1,128)}', space=vmem, size = 0x12000, scoped, tag = 'internal scratch']
  %s0 = inlined_call_operand.hbm [shape: f32[1,960], index: 0, kind: input, shape index: {}]
  %s1 = inlined_call_operand.hbm [shape: bf16[960,128], index: 1, kind: input, shape index: {}]
  %s2 = inlined_call_operand.vmem [shape: f32[1,40], index: 2, kind: input, shape index: {}]
  %s3 = inlined_call_operand.hbm [shape: f32[1,40], index: 3, kind: output, shape index: {}]
  %s4 = sld [smem:[#allocation0]]
  $region30: #{tpu_custom_call.1} parent=0
    _
  %s6 = ssub.s32 1, %s4
  %s7 = scalar_select 0, %s6, %s4
  $region1: #{tpu_custom_call.1} parent=0
    #allocation2 [shape = 'u8[4096]{0}', space=vmem, size = 0x1000, scoped, tag = 'input window, operand 0, single buffered']
    #allocation3 [shape = 's32[1]{0}', space=sflag, size = 0x4, scoped, tag = 'scoped memory for tpu_custom_call.1']
    #allocation4 [shape = 's32[1]{0}', space=sflag, size = 0x4, scoped, tag = 'scoped memory for tpu_custom_call.1']
    #allocation5 [shape = 'u8[245760]{0}', space=vmem, size = 0x3c000, scoped, tag = 'input window, operand 1, single buffered']
    #allocation6 [shape = 's32[1]{0}', space=sflag, size = 0x4, scoped, tag = 'scoped memory for tpu_custom_call.1']
    #allocation7 [shape = 'u8[512]{0}', space=vmem, size = 0x400, scoped, tag = 'output window, operand 0, single buffered']
    %8 = vsyncpa [#allocation3], 0
    %9 = vsyncpa [#allocation6], 0
    %10 = vsyncpa [#allocation4], 0
    // Predicated region
    $region2: #{tpu_custom_call.1} parent=1 // pred_check
      _
    $region3: #{tpu_custom_call.1} parent=1 // pred_check_branch
      %12 = sbr.rel (0) target = $region5
    $region4: #{tpu_custom_call.1} parent=1 // pred_region
      %s14 = ssub.s32 128, 128
      %15 = vsyncadd [#allocation3], %s14
      %s17 = sshll.u32 [#allocation2], 4
      %s18 = int_to_ptr.vmem [resolvable:$true] %s17
      %20 = dma.hbm_to_vmem [thread:$0]  %s0, 128, %s18, [#allocation3]
    $region5: #{tpu_custom_call.1} parent=1 // pred_fallthru
      _
    // Predicated region
    $region6: #{tpu_custom_call.1} parent=1 // pred_check
      _
    $region7: #{tpu_custom_call.1} parent=1 // pred_check_branch
      %22 = sbr.rel (0) target = $region9
    $region8: #{tpu_custom_call.1} parent=1 // pred_region
      %s24 = ssub.s32 7680, 7680
      %25 = vsyncadd [#allocation6], %s24
      %s26 = sshll.u32 [#allocation5], 4
      %s27 = int_to_ptr.vmem [resolvable:$true] %s26
      %32 = dma.hbm_to_vmem [thread:$0]  %s1, 7680, %s27, [#allocation6], 64, 64, 4
    $region9: #{tpu_custom_call.1} parent=1 // pred_fallthru
      _
    // Predicated region
    $region10: #{tpu_custom_call.1} parent=1 // pred_check
      _
    $region11: #{tpu_custom_call.1} parent=1 // pred_check_branch
      %34 = sbr.rel (0) target = $region13
    $region12: #{tpu_custom_call.1} parent=1 // pred_region
      _
    $region13: #{tpu_custom_call.1} parent=1 // pred_fallthru
      _
    // Predicated region
    $region14: #{tpu_custom_call.1} parent=1 // pred_check
      _
    $region15: #{tpu_custom_call.1} parent=1 // pred_check_branch
      %36 = sbr.rel (0) target = $region17
    $region16: #{tpu_custom_call.1} parent=1 // pred_region
      %37 = dma.done [#allocation3], 128
    $region17: #{tpu_custom_call.1} parent=1 // pred_fallthru
      _
    // Predicated region
    $region18: #{tpu_custom_call.1} parent=1 // pred_check
      _
    $region19: #{tpu_custom_call.1} parent=1 // pred_check_branch
      %39 = sbr.rel (0) target = $region21
    $region20: #{tpu_custom_call.1} parent=1 // pred_region
      %40 = dma.done [#allocation6], 7680
    $region21: #{tpu_custom_call.1} parent=1 // pred_fallthru
      _
    %v42 = vld [vmem:[#allocation2] sm:$0xff]
    %v44 = vlaneseq
    %v45 = vshrl.u32 %v44, 7
    %v46 = vsub.s32 0, %v45
    %v47 = vrot.slane %v42, %v46
    %v48 = vlaneseq
    %v49 = vshrl.u32 %v48, 7
    %v50 = vsub.s32 1, %v49
    %v51 = vrot.slane %v42, %v50
    %v52 = vlaneseq
    %v53 = vshrl.u32 %v52, 7
    %v54 = vsub.s32 2, %v53
    %v55 = vrot.slane %v42, %v54
    %v56 = vlaneseq
    %v57 = vshrl.u32 %v56, 7
    %v58 = vsub.s32 3, %v57
    %v59 = vrot.slane %v42, %v58
    %v60 = vlaneseq
    %v61 = vshrl.u32 %v60, 7
    %v62 = vsub.s32 4, %v61
    %v63 = vrot.slane %v42, %v62
    %v64 = vlaneseq
    %v65 = vshrl.u32 %v64, 7
    %v66 = vsub.s32 5, %v65
    %v67 = vrot.slane %v42, %v66
    %v68 = vlaneseq
    %v69 = vshrl.u32 %v68, 7
    %v70 = vsub.s32 6, %v69
    %v71 = vrot.slane %v42, %v70
    %v72 = vlaneseq
    %v73 = vshrl.u32 %v72, 7
    %v74 = vsub.s32 7, %v73
    %v75 = vrot.slane %v42, %v74
    %v84 = vpack.c.bf16 %v47, %v47
    %v85 = vpack.c.bf16 %v51, %v51
    %v86 = vpack.c.bf16 %v55, %v55
    %v87 = vpack.c.bf16 %v59, %v59
    %v88 = vpack.c.bf16 %v63, %v63
    %v89 = vpack.c.bf16 %v67, %v67
    %v90 = vpack.c.bf16 %v71, %v71
    %v91 = vpack.c.bf16 %v75, %v75
    %v92 = vld [vmem:[#allocation5] sm:$0xf]
    %v93 = vld [vmem:[#allocation5 + $0x4] sm:$0xf]
    %v94 = vld [vmem:[#allocation5 + $0x8] sm:$0xf]
    %v95 = vld [vmem:[#allocation5 + $0xc] sm:$0xf]
    %v96 = vld [vmem:[#allocation5 + $0x10] sm:$0xf]
    %v97 = vld [vmem:[#allocation5 + $0x14] sm:$0xf]
    %v98 = vld [vmem:[#allocation5 + $0x18] sm:$0xf]
    %v99 = vld [vmem:[#allocation5 + $0x1c] sm:$0xf]
    %v100 = vld [vmem:[#allocation5 + $0x20] sm:$0xf]
    %v101 = vld [vmem:[#allocation5 + $0x24] sm:$0xf]
    %v102 = vld [vmem:[#allocation5 + $0x28] sm:$0xf]
    %v103 = vld [vmem:[#allocation5 + $0x2c] sm:$0xf]
    %v104 = vld [vmem:[#allocation5 + $0x30] sm:$0xf]
    %v105 = vld [vmem:[#allocation5 + $0x34] sm:$0xf]
    %v106 = vld [vmem:[#allocation5 + $0x38] sm:$0xf]
    %v107 = vld [vmem:[#allocation5 + $0x3c] sm:$0xf]
    %v108 = vld [vmem:[#allocation5 + $0x40] sm:$0xf]
    %v109 = vld [vmem:[#allocation5 + $0x44] sm:$0xf]
    %v110 = vld [vmem:[#allocation5 + $0x48] sm:$0xf]
    %v111 = vld [vmem:[#allocation5 + $0x4c] sm:$0xf]
    %v112 = vld [vmem:[#allocation5 + $0x50] sm:$0xf]
    %v113 = vld [vmem:[#allocation5 + $0x54] sm:$0xf]
    %v114 = vld [vmem:[#allocation5 + $0x58] sm:$0xf]
    %v115 = vld [vmem:[#allocation5 + $0x5c] sm:$0xf]
    %v116 = vld [vmem:[#allocation5 + $0x60] sm:$0xf]
    %v117 = vld [vmem:[#allocation5 + $0x64] sm:$0xf]
    %v118 = vld [vmem:[#allocation5 + $0x68] sm:$0xf]
    %v119 = vld [vmem:[#allocation5 + $0x6c] sm:$0xf]
    %v120 = vld [vmem:[#allocation5 + $0x70] sm:$0xf]
    %v121 = vld [vmem:[#allocation5 + $0x74] sm:$0xf]
    %v122 = vld [vmem:[#allocation5 + $0x78] sm:$0xf]
    %v123 = vld [vmem:[#allocation5 + $0x7c] sm:$0xf]
    %v124 = vld [vmem:[#allocation5 + $0x80] sm:$0xf]
    %v125 = vld [vmem:[#allocation5 + $0x84] sm:$0xf]
    %v126 = vld [vmem:[#allocation5 + $0x88] sm:$0xf]
    %v127 = vld [vmem:[#allocation5 + $0x8c] sm:$0xf]
    %v128 = vld [vmem:[#allocation5 + $0x90] sm:$0xf]
    %v129 = vld [vmem:[#allocation5 + $0x94] sm:$0xf]
    %v130 = vld [vmem:[#allocation5 + $0x98] sm:$0xf]
    %v131 = vld [vmem:[#allocation5 + $0x9c] sm:$0xf]
    %v132 = vld [vmem:[#allocation5 + $0xa0] sm:$0xf]
    %v133 = vld [vmem:[#allocation5 + $0xa4] sm:$0xf]
    %v134 = vld [vmem:[#allocation5 + $0xa8] sm:$0xf]
    %v135 = vld [vmem:[#allocation5 + $0xac] sm:$0xf]
    %v136 = vld [vmem:[#allocation5 + $0xb0] sm:$0xf]
    %v137 = vld [vmem:[#allocation5 + $0xb4] sm:$0xf]
    %v138 = vld [vmem:[#allocation5 + $0xb8] sm:$0xf]
    %v139 = vld [vmem:[#allocation5 + $0xbc] sm:$0xf]
    %v140 = vld [vmem:[#allocation5 + $0xc0] sm:$0xf]
    %v141 = vld [vmem:[#allocation5 + $0xc4] sm:$0xf]
    %v142 = vld [vmem:[#allocation5 + $0xc8] sm:$0xf]
    %v143 = vld [vmem:[#allocation5 + $0xcc] sm:$0xf]
    %v144 = vld [vmem:[#allocation5 + $0xd0] sm:$0xf]
    %v145 = vld [vmem:[#allocation5 + $0xd4] sm:$0xf]
    %v146 = vld [vmem:[#allocation5 + $0xd8] sm:$0xf]
    %v147 = vld [vmem:[#allocation5 + $0xdc] sm:$0xf]
    %v148 = vld [vmem:[#allocation5 + $0xe0] sm:$0xf]
    %v149 = vld [vmem:[#allocation5 + $0xe4] sm:$0xf]
    %v150 = vld [vmem:[#allocation5 + $0xe8] sm:$0xf]
    %v151 = vld [vmem:[#allocation5 + $0xec] sm:$0xf]
    %v152 = vld [vmem:[#allocation5 + $0xf0] sm:$0xf]
    %v153 = vld [vmem:[#allocation5 + $0xf4] sm:$0xf]
    %v154 = vld [vmem:[#allocation5 + $0xf8] sm:$0xf]
    %v155 = vld [vmem:[#allocation5 + $0xfc] sm:$0xf]
    %v156 = vld [vmem:[#allocation5 + $0x100] sm:$0xf]
    %v157 = vld [vmem:[#allocation5 + $0x104] sm:$0xf]
    %v158 = vld [vmem:[#allocation5 + $0x108] sm:$0xf]
    %v159 = vld [vmem:[#allocation5 + $0x10c] sm:$0xf]
    %v160 = vld [vmem:[#allocation5 + $0x110] sm:$0xf]
    %v161 = vld [vmem:[#allocation5 + $0x114] sm:$0xf]
    %v162 = vld [vmem:[#allocation5 + $0x118] sm:$0xf]
    %v163 = vld [vmem:[#allocation5 + $0x11c] sm:$0xf]
    %v164 = vld [vmem:[#allocation5 + $0x120] sm:$0xf]
    %v165 = vld [vmem:[#allocation5 + $0x124] sm:$0xf]
    %v166 = vld [vmem:[#allocation5 + $0x128] sm:$0xf]
    %v167 = vld [vmem:[#allocation5 + $0x12c] sm:$0xf]
    %v168 = vld [vmem:[#allocation5 + $0x130] sm:$0xf]
    %v169 = vld [vmem:[#allocation5 + $0x134] sm:$0xf]
    %v170 = vld [vmem:[#allocation5 + $0x138] sm:$0xf]
    %v171 = vld [vmem:[#allocation5 + $0x13c] sm:$0xf]
    %v172 = vld [vmem:[#allocation5 + $0x140] sm:$0xf]
    %v173 = vld [vmem:[#allocation5 + $0x144] sm:$0xf]
    %v174 = vld [vmem:[#allocation5 + $0x148] sm:$0xf]
    %v175 = vld [vmem:[#allocation5 + $0x14c] sm:$0xf]
    %v176 = vld [vmem:[#allocation5 + $0x150] sm:$0xf]
    %v177 = vld [vmem:[#allocation5 + $0x154] sm:$0xf]
    %v178 = vld [vmem:[#allocation5 + $0x158] sm:$0xf]
    %v179 = vld [vmem:[#allocation5 + $0x15c] sm:$0xf]
    %v180 = vld [vmem:[#allocation5 + $0x160] sm:$0xf]
    %v181 = vld [vmem:[#allocation5 + $0x164] sm:$0xf]
    %v182 = vld [vmem:[#allocation5 + $0x168] sm:$0xf]
    %v183 = vld [vmem:[#allocation5 + $0x16c] sm:$0xf]
    %v184 = vld [vmem:[#allocation5 + $0x170] sm:$0xf]
    %v185 = vld [vmem:[#allocation5 + $0x174] sm:$0xf]
    %v186 = vld [vmem:[#allocation5 + $0x178] sm:$0xf]
    %v187 = vld [vmem:[#allocation5 + $0x17c] sm:$0xf]
    %v188 = vld [vmem:[#allocation5 + $0x180] sm:$0xf]
    %v189 = vld [vmem:[#allocation5 + $0x184] sm:$0xf]
    %v190 = vld [vmem:[#allocation5 + $0x188] sm:$0xf]
    %v191 = vld [vmem:[#allocation5 + $0x18c] sm:$0xf]
    %v192 = vld [vmem:[#allocation5 + $0x190] sm:$0xf]
    %v193 = vld [vmem:[#allocation5 + $0x194] sm:$0xf]
    %v194 = vld [vmem:[#allocation5 + $0x198] sm:$0xf]
    %v195 = vld [vmem:[#allocation5 + $0x19c] sm:$0xf]
    %v196 = vld [vmem:[#allocation5 + $0x1a0] sm:$0xf]
    %v197 = vld [vmem:[#allocation5 + $0x1a4] sm:$0xf]
    %v198 = vld [vmem:[#allocation5 + $0x1a8] sm:$0xf]
    %v199 = vld [vmem:[#allocation5 + $0x1ac] sm:$0xf]
    %v200 = vld [vmem:[#allocation5 + $0x1b0] sm:$0xf]
    %v201 = vld [vmem:[#allocation5 + $0x1b4] sm:$0xf]
    %v202 = vld [vmem:[#allocation5 + $0x1b8] sm:$0xf]
    %v203 = vld [vmem:[#allocation5 + $0x1bc] sm:$0xf]
    %v204 = vld [vmem:[#allocation5 + $0x1c0] sm:$0xf]
    %v205 = vld [vmem:[#allocation5 + $0x1c4] sm:$0xf]
    %v206 = vld [vmem:[#allocation5 + $0x1c8] sm:$0xf]
    %v207 = vld [vmem:[#allocation5 + $0x1cc] sm:$0xf]
    %v208 = vld [vmem:[#allocation5 + $0x1d0] sm:$0xf]
    %v209 = vld [vmem:[#allocation5 + $0x1d4] sm:$0xf]
    %v210 = vld [vmem:[#allocation5 + $0x1d8] sm:$0xf]
    %v211 = vld [vmem:[#allocation5 + $0x1dc] sm:$0xf]
    %v332 = vunpack.c.l.b16 %v92
    %v333 = vunpack.c.l.b16 %v93
    %v334 = vunpack.c.l.b16 %v94
    %v335 = vunpack.c.l.b16 %v95
    %v336 = vunpack.c.l.b16 %v96
    %v337 = vunpack.c.l.b16 %v97
    %v338 = vunpack.c.l.b16 %v98
    %v339 = vunpack.c.l.b16 %v99
    %v340 = vunpack.c.l.b16 %v100
    %v341 = vunpack.c.l.b16 %v101
    %v342 = vunpack.c.l.b16 %v102
    %v343 = vunpack.c.l.b16 %v103
    %v344 = vunpack.c.l.b16 %v104
    %v345 = vunpack.c.l.b16 %v105
    %v346 = vunpack.c.l.b16 %v106
    %v347 = vunpack.c.l.b16 %v107
    %v348 = vunpack.c.l.b16 %v108
    %v349 = vunpack.c.l.b16 %v109
    %v350 = vunpack.c.l.b16 %v110
    %v351 = vunpack.c.l.b16 %v111
    %v352 = vunpack.c.l.b16 %v112
    %v353 = vunpack.c.l.b16 %v113
    %v354 = vunpack.c.l.b16 %v114
    %v355 = vunpack.c.l.b16 %v115
    %v356 = vunpack.c.l.b16 %v116
    %v357 = vunpack.c.l.b16 %v117
    %v358 = vunpack.c.l.b16 %v118
    %v359 = vunpack.c.l.b16 %v119
    %v360 = vunpack.c.l.b16 %v120
    %v361 = vunpack.c.l.b16 %v121
    %v362 = vunpack.c.l.b16 %v122
    %v363 = vunpack.c.l.b16 %v123
    %v364 = vunpack.c.l.b16 %v124
    %v365 = vunpack.c.l.b16 %v125
    %v366 = vunpack.c.l.b16 %v126
    %v367 = vunpack.c.l.b16 %v127
    %v368 = vunpack.c.l.b16 %v128
    %v369 = vunpack.c.l.b16 %v129
    %v370 = vunpack.c.l.b16 %v130
    %v371 = vunpack.c.l.b16 %v131
    %v372 = vunpack.c.l.b16 %v132
    %v373 = vunpack.c.l.b16 %v133
    %v374 = vunpack.c.l.b16 %v134
    %v375 = vunpack.c.l.b16 %v135
    %v376 = vunpack.c.l.b16 %v136
    %v377 = vunpack.c.l.b16 %v137
    %v378 = vunpack.c.l.b16 %v138
    %v379 = vunpack.c.l.b16 %v139
    %v380 = vunpack.c.l.b16 %v140
    %v381 = vunpack.c.l.b16 %v141
    %v382 = vunpack.c.l.b16 %v142
    %v383 = vunpack.c.l.b16 %v143
    %v384 = vunpack.c.l.b16 %v144
    %v385 = vunpack.c.l.b16 %v145
    %v386 = vunpack.c.l.b16 %v146
    %v387 = vunpack.c.l.b16 %v147
    %v388 = vunpack.c.l.b16 %v148
    %v389 = vunpack.c.l.b16 %v149
    %v390 = vunpack.c.l.b16 %v150
    %v391 = vunpack.c.l.b16 %v151
    %v392 = vunpack.c.l.b16 %v152
    %v393 = vunpack.c.l.b16 %v153
    %v394 = vunpack.c.l.b16 %v154
    %v395 = vunpack.c.l.b16 %v155
    %v396 = vunpack.c.l.b16 %v156
    %v397 = vunpack.c.l.b16 %v157
    %v398 = vunpack.c.l.b16 %v158
    %v399 = vunpack.c.l.b16 %v159
    %v400 = vunpack.c.l.b16 %v160
    %v401 = vunpack.c.l.b16 %v161
    %v402 = vunpack.c.l.b16 %v162
    %v403 = vunpack.c.l.b16 %v163
    %v404 = vunpack.c.l.b16 %v164
    %v405 = vunpack.c.l.b16 %v165
    %v406 = vunpack.c.l.b16 %v166
    %v407 = vunpack.c.l.b16 %v167
    %v408 = vunpack.c.l.b16 %v168
    %v409 = vunpack.c.l.b16 %v169
    %v410 = vunpack.c.l.b16 %v170
    %v411 = vunpack.c.l.b16 %v171
    %v412 = vunpack.c.l.b16 %v172
    %v413 = vunpack.c.l.b16 %v173
    %v414 = vunpack.c.l.b16 %v174
    %v415 = vunpack.c.l.b16 %v175
    %v416 = vunpack.c.l.b16 %v176
    %v417 = vunpack.c.l.b16 %v177
    %v418 = vunpack.c.l.b16 %v178
    %v419 = vunpack.c.l.b16 %v179
    %v420 = vunpack.c.l.b16 %v180
    %v421 = vunpack.c.l.b16 %v181
    %v422 = vunpack.c.l.b16 %v182
    %v423 = vunpack.c.l.b16 %v183
    %v424 = vunpack.c.l.b16 %v184
    %v425 = vunpack.c.l.b16 %v185
    %v426 = vunpack.c.l.b16 %v186
    %v427 = vunpack.c.l.b16 %v187
    %v428 = vunpack.c.l.b16 %v188
    %v429 = vunpack.c.l.b16 %v189
    %v430 = vunpack.c.l.b16 %v190
    %v431 = vunpack.c.l.b16 %v191
    %v432 = vunpack.c.l.b16 %v192
    %v433 = vunpack.c.l.b16 %v193
    %v434 = vunpack.c.l.b16 %v194
    %v435 = vunpack.c.l.b16 %v195
    %v436 = vunpack.c.l.b16 %v196
    %v437 = vunpack.c.l.b16 %v197
    %v438 = vunpack.c.l.b16 %v198
    %v439 = vunpack.c.l.b16 %v199
    %v440 = vunpack.c.l.b16 %v200
    %v441 = vunpack.c.l.b16 %v201
    %v442 = vunpack.c.l.b16 %v202
    %v443 = vunpack.c.l.b16 %v203
    %v444 = vunpack.c.l.b16 %v204
    %v445 = vunpack.c.l.b16 %v205
    %v446 = vunpack.c.l.b16 %v206
    %v447 = vunpack.c.l.b16 %v207
    %v448 = vunpack.c.l.b16 %v208
    %v449 = vunpack.c.l.b16 %v209
    %v450 = vunpack.c.l.b16 %v210
    %v451 = vunpack.c.l.b16 %v211
    %v452 = vpack.c.b16 %v333, %v332
    %v453 = vpack.c.b16 %v335, %v334
    %v454 = vpack.c.b16 %v337, %v336
    %v455 = vpack.c.b16 %v339, %v338
    %v456 = vpack.c.b16 %v341, %v340
    %v457 = vpack.c.b16 %v343, %v342
    %v458 = vpack.c.b16 %v345, %v344
    %v459 = vpack.c.b16 %v347, %v346
    %v460 = vpack.c.b16 %v349, %v348
    %v461 = vpack.c.b16 %v351, %v350
    %v462 = vpack.c.b16 %v353, %v352
    %v463 = vpack.c.b16 %v355, %v354
    %v464 = vpack.c.b16 %v357, %v356
    %v465 = vpack.c.b16 %v359, %v358
    %v466 = vpack.c.b16 %v361, %v360
    %v467 = vpack.c.b16 %v363, %v362
    %v468 = vpack.c.b16 %v365, %v364
    %v469 = vpack.c.b16 %v367, %v366
    %v470 = vpack.c.b16 %v369, %v368
    %v471 = vpack.c.b16 %v371, %v370
    %v472 = vpack.c.b16 %v373, %v372
    %v473 = vpack.c.b16 %v375, %v374
    %v474 = vpack.c.b16 %v377, %v376
    %v475 = vpack.c.b16 %v379, %v378
    %v476 = vpack.c.b16 %v381, %v380
    %v477 = vpack.c.b16 %v383, %v382
    %v478 = vpack.c.b16 %v385, %v384
    %v479 = vpack.c.b16 %v387, %v386
    %v480 = vpack.c.b16 %v389, %v388
    %v481 = vpack.c.b16 %v391, %v390
    %v482 = vpack.c.b16 %v393, %v392
    %v483 = vpack.c.b16 %v395, %v394
    %v484 = vpack.c.b16 %v397, %v396
    %v485 = vpack.c.b16 %v399, %v398
    %v486 = vpack.c.b16 %v401, %v400
    %v487 = vpack.c.b16 %v403, %v402
    %v488 = vpack.c.b16 %v405, %v404
    %v489 = vpack.c.b16 %v407, %v406
    %v490 = vpack.c.b16 %v409, %v408
    %v491 = vpack.c.b16 %v411, %v410
    %v492 = vpack.c.b16 %v413, %v412
    %v493 = vpack.c.b16 %v415, %v414
    %v494 = vpack.c.b16 %v417, %v416
    %v495 = vpack.c.b16 %v419, %v418
    %v496 = vpack.c.b16 %v421, %v420
    %v497 = vpack.c.b16 %v423, %v422
    %v498 = vpack.c.b16 %v425, %v424
    %v499 = vpack.c.b16 %v427, %v426
    %v500 = vpack.c.b16 %v429, %v428
    %v501 = vpack.c.b16 %v431, %v430
    %v502 = vpack.c.b16 %v433, %v432
    %v503 = vpack.c.b16 %v435, %v434
    %v504 = vpack.c.b16 %v437, %v436
    %v505 = vpack.c.b16 %v439, %v438
    %v506 = vpack.c.b16 %v441, %v440
    %v507 = vpack.c.b16 %v443, %v442
    %v508 = vpack.c.b16 %v445, %v444
    %v509 = vpack.c.b16 %v447, %v446
    %v510 = vpack.c.b16 %v449, %v448
    %v511 = vpack.c.b16 %v451, %v450
    %vm572 = vcmask 523264
    %v574 = vsel %vm572, %v91, 0
    %576 = vmatprep.subr.bf16.mxu0 0
    %577 = vmatpush1.bf16.msra.mxu0 %v452
    %578 = vmatprep.subr.bf16.mxu0 0
    %579 = vmatpush1.bf16.msra.mxu0 %v453
    %580 = vmatprep.subr.bf16.mxu0 0
    %581 = vmatpush1.bf16.msra.mxu0 %v454
    %582 = vmatprep.subr.bf16.mxu0 0
    %583 = vmatpush1.bf16.msra.mxu0 %v455
    %584 = vmatprep.subr.bf16.mxu0 0
    %585 = vmatpush1.bf16.msra.mxu0 %v456
    %586 = vmatprep.subr.bf16.mxu0 0
    %587 = vmatpush1.bf16.msra.mxu0 %v457
    %588 = vmatprep.subr.bf16.mxu0 0
    %589 = vmatpush1.bf16.msra.mxu0 %v458
    %590 = vmatprep.subr.bf16.mxu0 0
    %591 = vmatpush1.bf16.msra.mxu0 %v459
    %592 = vmatprep.subr.bf16.mxu0 0
    %593 = vmatpush1.bf16.msra.mxu0 %v460
    %594 = vmatprep.subr.bf16.mxu0 0
    %595 = vmatpush1.bf16.msra.mxu0 %v461
    %596 = vmatprep.subr.bf16.mxu0 0
    %597 = vmatpush1.bf16.msra.mxu0 %v462
    %598 = vmatprep.subr.bf16.mxu0 0
    %599 = vmatpush1.bf16.msra.mxu0 %v463
    %600 = vmatprep.subr.bf16.mxu0 0
    %601 = vmatpush1.bf16.msra.mxu0 %v464
    %602 = vmatprep.subr.bf16.mxu0 0
    %603 = vmatpush1.bf16.msra.mxu0 %v465
    %604 = vmatprep.subr.bf16.mxu0 0
    %605 = vmatpush1.bf16.msra.mxu0 %v466
    %606 = vmatprep.subr.bf16.mxu0 0
    %607 = vmatpush1.bf16.msra.mxu0 %v467
    %608 = vmatprep.mubr.bf16.mxu0 %v85
    %609 = vmatmul.mubr.bf16.gmra.mrb[0].mxu0 %v84
    %v610 = vpop.f32.mrb[0].mxu0
    %v611 = vadd.f32 0.0, %v610
    %v612 = vpop.f32.mrb[0].mxu0
    %v613 = vpop.f32.mrb[0].mxu0
    %v614 = vpop.f32.mrb[0].mxu0
    %615 = vdwg.mxu0
    %616 = vmatprep.subr.bf16.mxu0 0
    %617 = vmatpush1.bf16.msra.mxu0 %v468
    %618 = vmatprep.subr.bf16.mxu0 0
    %619 = vmatpush1.bf16.msra.mxu0 %v469
    %620 = vmatprep.subr.bf16.mxu0 0
    %621 = vmatpush1.bf16.msra.mxu0 %v470
    %622 = vmatprep.subr.bf16.mxu0 0
    %623 = vmatpush1.bf16.msra.mxu0 %v471
    %624 = vmatprep.subr.bf16.mxu0 0
    %625 = vmatpush1.bf16.msra.mxu0 %v472
    %626 = vmatprep.subr.bf16.mxu0 0
    %627 = vmatpush1.bf16.msra.mxu0 %v473
    %628 = vmatprep.subr.bf16.mxu0 0
    %629 = vmatpush1.bf16.msra.mxu0 %v474
    %630 = vmatprep.subr.bf16.mxu0 0
    %631 = vmatpush1.bf16.msra.mxu0 %v475
    %632 = vmatprep.subr.bf16.mxu0 0
    %633 = vmatpush1.bf16.msra.mxu0 %v476
    %634 = vmatprep.subr.bf16.mxu0 0
    %635 = vmatpush1.bf16.msra.mxu0 %v477
    %636 = vmatprep.subr.bf16.mxu0 0
    %637 = vmatpush1.bf16.msra.mxu0 %v478
    %638 = vmatprep.subr.bf16.mxu0 0
    %639 = vmatpush1.bf16.msra.mxu0 %v479
    %640 = vmatprep.subr.bf16.mxu0 0
    %641 = vmatpush1.bf16.msra.mxu0 %v480
    %642 = vmatprep.subr.bf16.mxu0 0
    %643 = vmatpush1.bf16.msra.mxu0 %v481
    %644 = vmatprep.subr.bf16.mxu0 0
    %645 = vmatpush1.bf16.msra.mxu0 %v482
    %646 = vmatprep.subr.bf16.mxu0 0
    %647 = vmatpush1.bf16.msra.mxu0 %v483
    %648 = vmatprep.mubr.bf16.mxu0 %v87
    %649 = vmatmul.mubr.bf16.gmra.mrb[0].mxu0 %v86
    %v650 = vpop.f32.mrb[0].mxu0
    %v651 = vadd.f32 %v611, %v650
    %v652 = vpop.f32.mrb[0].mxu0
    %v653 = vpop.f32.mrb[0].mxu0
    %v654 = vpop.f32.mrb[0].mxu0
    %655 = vdwg.mxu0
    %656 = vmatprep.subr.bf16.mxu0 0
    %657 = vmatpush1.bf16.msra.mxu0 %v484
    %658 = vmatprep.subr.bf16.mxu0 0
    %659 = vmatpush1.bf16.msra.mxu0 %v485
    %660 = vmatprep.subr.bf16.mxu0 0
    %661 = vmatpush1.bf16.msra.mxu0 %v486
    %662 = vmatprep.subr.bf16.mxu0 0
    %663 = vmatpush1.bf16.msra.mxu0 %v487
    %664 = vmatprep.subr.bf16.mxu0 0
    %665 = vmatpush1.bf16.msra.mxu0 %v488
    %666 = vmatprep.subr.bf16.mxu0 0
    %667 = vmatpush1.bf16.msra.mxu0 %v489
    %668 = vmatprep.subr.bf16.mxu0 0
    %669 = vmatpush1.bf16.msra.mxu0 %v490
    %670 = vmatprep.subr.bf16.mxu0 0
    %671 = vmatpush1.bf16.msra.mxu0 %v491
    %672 = vmatprep.subr.bf16.mxu0 0
    %673 = vmatpush1.bf16.msra.mxu0 %v492
    %674 = vmatprep.subr.bf16.mxu0 0
    %675 = vmatpush1.bf16.msra.mxu0 %v493
    %676 = vmatprep.subr.bf16.mxu0 0
    %677 = vmatpush1.bf16.msra.mxu0 %v494
    %678 = vmatprep.subr.bf16.mxu0 0
    %679 = vmatpush1.bf16.msra.mxu0 %v495
    %680 = vmatprep.subr.bf16.mxu0 0
    %681 = vmatpush1.bf16.msra.mxu0 %v496
    %682 = vmatprep.subr.bf16.mxu0 0
    %683 = vmatpush1.bf16.msra.mxu0 %v497
    %684 = vmatprep.subr.bf16.mxu0 0
    %685 = vmatpush1.bf16.msra.mxu0 %v498
    %686 = vmatprep.subr.bf16.mxu0 0
    %687 = vmatpush1.bf16.msra.mxu0 %v499
    %688 = vmatprep.mubr.bf16.mxu0 %v89
    %689 = vmatmul.mubr.bf16.gmra.mrb[0].mxu0 %v88
    %v690 = vpop.f32.mrb[0].mxu0
    %v691 = vadd.f32 %v651, %v690
    %v692 = vpop.f32.mrb[0].mxu0
    %v693 = vpop.f32.mrb[0].mxu0
    %v694 = vpop.f32.mrb[0].mxu0
    %695 = vdwg.mxu0
    %696 = vmatprep.subr.bf16.mxu0 0
    %697 = vmatpush1.bf16.msra.mxu0 %v500
    %698 = vmatprep.subr.bf16.mxu0 0
    %699 = vmatpush1.bf16.msra.mxu0 %v501
    %700 = vmatprep.subr.bf16.mxu0 0
    %701 = vmatpush1.bf16.msra.mxu0 %v502
    %702 = vmatprep.subr.bf16.mxu0 0
    %703 = vmatpush1.bf16.msra.mxu0 %v503
    %704 = vmatprep.subr.bf16.mxu0 0
    %705 = vmatpush1.bf16.msra.mxu0 %v504
    %706 = vmatprep.subr.bf16.mxu0 0
    %707 = vmatpush1.bf16.msra.mxu0 %v505
    %708 = vmatprep.subr.bf16.mxu0 0
    %709 = vmatpush1.bf16.msra.mxu0 %v506
    %710 = vmatprep.subr.bf16.mxu0 0
    %711 = vmatpush1.bf16.msra.mxu0 %v507
    %712 = vmatprep.subr.bf16.mxu0 0
    %713 = vmatpush1.bf16.msra.mxu0 %v508
    %714 = vmatprep.subr.bf16.mxu0 0
    %715 = vmatpush1.bf16.msra.mxu0 %v509
    %716 = vmatprep.subr.bf16.mxu0 0
    %717 = vmatpush1.bf16.msra.mxu0 %v510
    %718 = vmatprep.subr.bf16.mxu0 0
    %719 = vmatpush1.bf16.msra.mxu0 %v511
    %720 = vmatprep.subr.bf16.mxu0 0
    %721 = vmatpush1.bf16.msra.mxu0 0
    %722 = vmatprep.subr.bf16.mxu0 0
    %723 = vmatpush1.bf16.msra.mxu0 0
    %724 = vmatprep.subr.bf16.mxu0 0
    %725 = vmatpush1.bf16.msra.mxu0 0
    %726 = vmatprep.subr.bf16.mxu0 0
    %727 = vmatpush1.bf16.msra.mxu0 0
    %728 = vmatprep.mubr.bf16.mxu0 %v574
    %729 = vmatmul.mubr.bf16.gmra.mrb[0].mxu0 %v90
    %v730 = vpop.f32.mrb[0].mxu0
    %v731 = vadd.f32 %v691, %v730
    %v732 = vpop.f32.mrb[0].mxu0
    %v733 = vpop.f32.mrb[0].mxu0
    %v734 = vpop.f32.mrb[0].mxu0
    %735 = vdwg.mxu0
    %v736 = vld [vmem:[%s2] sm:$0x1]
    %v737 = vadd.f32 %v731, %v736
    %vm738 = vcmask 319488
    %739 = vst.msk [vmem:[#allocation7] sm:$0x1] %vm738, %v737
    // Predicated region
    $region22: #{tpu_custom_call.1} parent=1 // pred_check
      _
    $region23: #{tpu_custom_call.1} parent=1 // pred_check_branch
      %741 = sbr.rel (0) target = $region25
    $region24: #{tpu_custom_call.1} parent=1 // pred_region
      %s743 = ssub.s32 16, 16
      %744 = vsyncadd [#allocation4], %s743
      %s746 = sshll.u32 [#allocation7], 4
      %s747 = int_to_ptr.vmem [resolvable:$true] %s746
      %749 = dma.vmem_to_hbm [thread:$0]  %s747, 16, %s3, [#allocation4]
    $region25: #{tpu_custom_call.1} parent=1 // pred_fallthru
      _
    // Predicated region
    $region26: #{tpu_custom_call.1} parent=1 // pred_check
      _
    $region27: #{tpu_custom_call.1} parent=1 // pred_check_branch
      %751 = sbr.rel (0) target = $region29
    $region28: #{tpu_custom_call.1} parent=1 // pred_region
      %752 = dma.done [#allocation4], 16
    $region29: #{tpu_custom_call.1} parent=1 // pred_fallthru
      _
    %753 = vsyncpa [#allocation3], 1
    %754 = vsyncpa [#allocation6], 1
    %755 = vsyncpa [#allocation4], 1

</llo_original>
